<compile_context>
chip_gen: v7x
topology: tpu7x:2x2x1
jax: 0.10.0
libtpu: 0.0.40
codegen_flags: <defaults>
</compile_context>

<pallas_src>
import functools
import math

import numpy as np

import jax
import jax.numpy as jnp
from jax.experimental import pallas as pl
from jax.experimental.pallas import tpu as pltpu

LANE = 128
NEG = -1e30   # finite "-inf": masked-only rows/tiles never produce inf - inf


def _round_up(n, m):
    return ((n + m - 1) // m) * m


def _pick_block(np_total, candidates):
    for c in candidates:
        if np_total % c == 0 and np_total >= c:
            return c
    return np_total


def _pick_row_block(np_total, candidates):
    """Prefer >= 2 row tiles so the 'parallel' axis feeds both v7x TCs."""
    for c in candidates:
        if np_total % c == 0 and np_total // c >= 2:
            return c
    for c in candidates:
        if np_total % c == 0:
            return c
    return np_total


# --------------------------------------------------------------------------
# Fused projection kernel:
#   y = x @ [Wl | Wr] + [bl | br]          (single bf16 MXU matmul)
#   xl = y[:, :Dp]  (+ 0.6*att_h.xl_h packed into lane d_real+h), bf16 out
#   xr = y[:, Dp:]  (+ 0.6*att_h.xr_h packed into lane d_real+h), f32  out
# --------------------------------------------------------------------------
def _proj_kernel(x_ref, w_ref, b_ref, ap_ref, xl_ref, xr_ref):
    dp = ap_ref.shape[0]
    y = jnp.dot(x_ref[...], w_ref[...], preferred_element_type=jnp.float32)
    y = y + b_ref[...]
    yl = y[:, :dp]
    yr = y[:, dp:]
    ap = ap_ref[...]                       # (Dp, Dp): ap[h*C+c, d_real+h] = 0.6*att[h,c]
    sl = jnp.dot(yl, ap, preferred_element_type=jnp.float32)
    sr = jnp.dot(yr, ap, preferred_element_type=jnp.float32)
    xl_ref[...] = (yl + sl).astype(xl_ref.dtype)
    xr_ref[...] = yr + sr


# --------------------------------------------------------------------------
# Attention kernel: flash-style online softmax over the (few) non-empty
# source tiles of each target row tile, all heads, lane-dense output.
# --------------------------------------------------------------------------
def _gatv2_attn_kernel(col_ref, ncol_ref, att4_ref, xr_ref, xl_ref, adj_ref,
                       bias_ref, out_ref, m_sc, l_sc, acc_sc, *,
                       heads, out_ch, d_real, max_cols, fuse_act):
    """One (row-tile i, visit jj) step.

    col_ref  : (NI*max_cols,) SMEM i32  column-tile ids per row tile (padded)
    ncol_ref : (NI,)          SMEM i32  number of valid column tiles per row
    att4_ref : (d_real,)      SMEM f32  0.4 * att (head-major channels)
    xr_ref   : (bi, Dp)       VMEM f32  lin_r targets (+ 0.6*att.xr at d_real+h)
    xl_ref   : (bj, Dp)       VMEM bf16 lin_l sources (+ 0.6*att.xl at d_real+h)
    adj_ref  : (bi, bj)       VMEM i8   0/1 mask, adj[i, j] = 1 iff edge j -> i
    bias_ref : (1, Dp)        VMEM f32  lane-packed bias
    out_ref  : (bi, Dp)                 lane-dense packed per-head output
    """
    i = pl.program_id(0)
    jj = pl.program_id(1)

    @pl.when(jj == 0)
    def _init():
        m_sc[...] = jnp.full(m_sc.shape, NEG, jnp.float32)
        l_sc[...] = jnp.zeros(l_sc.shape, jnp.float32)
        acc_sc[...] = jnp.zeros(acc_sc.shape, jnp.float32)

    @pl.when(jj < ncol_ref[i])
    def _step():
        edge = adj_ref[...].astype(jnp.float32) > 0            # (bi, bj)
        xr = xr_ref[...]                                       # (bi, Dp) f32
        xl_bf = xl_ref[...]                                    # (bj, Dp) bf16
        xlT = xl_bf.astype(jnp.float32).T                      # (Dp, bj)  XLU

        for h in range(heads):
            # Linear part of leaky_relu folded into a single broadcast add.
            e = (xr[:, d_real + h:d_real + h + 1]
                 + xlT[d_real + h:d_real + h + 1, :])          # (bi, bj)
            for c in range(out_ch):
                d = h * out_ch + c
                z = xr[:, d:d + 1] + xlT[d:d + 1, :]
                e = e + att4_ref[d] * jnp.abs(z)
            e = jnp.where(edge, e, NEG)

            # online softmax over visited source tiles
            m_prev = m_sc[h]                                   # (bi, 1)
            m_new = jnp.maximum(m_prev, jnp.max(e, axis=1, keepdims=True))
            corr = jnp.exp(m_prev - m_new)
            p = jnp.where(edge, jnp.exp(e - m_new), 0.0)       # (bi, bj) f32
            l_sc[h] = corr * l_sc[h] + jnp.sum(p, axis=1, keepdims=True)
            acc_sc[h] = corr * acc_sc[h] + jnp.dot(
                p.astype(jnp.bfloat16), xl_bf,
                preferred_element_type=jnp.float32)
            m_sc[h] = m_new

    @pl.when(jj == max_cols - 1)
    def _finalize():
        dp = out_ref.shape[-1]
        lane = jax.lax.broadcasted_iota(jnp.int32, (1, dp), 1)
        out = jnp.zeros(out_ref.shape, jnp.float32)
        for h in range(heads):
            inv_l = pl.reciprocal(jnp.maximum(l_sc[h], 1e-20), approx=True)
            seg = (lane >= h * out_ch) & (lane < (h + 1) * out_ch)
            out = out + jnp.where(seg, acc_sc[h] * inv_l, 0.0)
        out = out + bias_ref[...]
        if fuse_act:
            out = jnp.where(out > 0, out, 0.01 * out)          # GAT leakyrelu
        out_ref[...] = out.astype(out_ref.dtype)               # lane-dense store


# --------------------------------------------------------------------------
# Dense GATv2Conv wrapper (eval mode)
# --------------------------------------------------------------------------
def gatv2_conv(x, adj, params, *, heads, out_ch, concat, fuse_act=False,
               out_dtype=jnp.float32):
    """x: (Np, F); rows past the real node count are zero padding.
       adj: (Np, Np) int8 0/1 mask with self loops, adj[i, j]=1 iff edge j->i."""
    Np, Fin = x.shape
    d_real = heads * out_ch
    Fp = _round_up(Fin, LANE)
    Dp = _round_up(d_real + heads, LANE)   # extra lanes hold the linear scores

    x_bf = jnp.pad(x, ((0, 0), (0, Fp - Fin))).astype(jnp.bfloat16)

    def pad_w(w):
        return jnp.pad(w, ((0, Fp - w.shape[0]), (0, Dp - d_real))).astype(jnp.bfloat16)

    def pad_b(b):
        return jnp.pad(b.astype(jnp.float32), (0, Dp - d_real))

    w = jnp.concatenate([pad_w(params["Wl"]), pad_w(params["Wr"])], axis=1)  # (Fp, 2Dp)
    b = jnp.concatenate([pad_b(params["bl"]), pad_b(params["br"])]).reshape(1, 2 * Dp)

    att = params["att"].reshape(-1).astype(jnp.float32)          # (d_real,)
    rows = jnp.arange(d_real)
    cols = d_real + rows // out_ch
    ap = jnp.zeros((Dp, Dp), jnp.float32).at[rows, cols].set(0.6 * att)
    att4 = 0.4 * att                                             # SMEM scalars

    # bias: lane-packed; replicated per head when concat=False so the head
    # mean in the wrapper recovers exactly "+ bias".
    bias_vec = params["bias"] if concat else jnp.tile(params["bias"], heads)
    bias_row = pad_b(bias_vec).reshape(1, Dp)

    # ---- fused projection (one bf16 MXU matmul per row tile) ----
    bi_p = _pick_row_block(Np, (512, 256, 128, 64))
    xl, xr = pl.pallas_call(
        _proj_kernel,
        out_shape=(jax.ShapeDtypeStruct((Np, Dp), jnp.bfloat16),
                   jax.ShapeDtypeStruct((Np, Dp), jnp.float32)),
        grid=(Np // bi_p,),
        in_specs=[
            pl.BlockSpec((bi_p, Fp), lambda i: (i, 0)),
            pl.BlockSpec((Fp, 2 * Dp), lambda i: (0, 0)),
            pl.BlockSpec((1, 2 * Dp), lambda i: (0, 0)),
            pl.BlockSpec((Dp, Dp), lambda i: (0, 0)),
        ],
        out_specs=(pl.BlockSpec((bi_p, Dp), lambda i: (i, 0)),
                   pl.BlockSpec((bi_p, Dp), lambda i: (i, 0))),
        compiler_params=pltpu.CompilerParams(
            dimension_semantics=("parallel",)),
    )(x_bf, w, b, ap)

    # ---- block-sparse schedule: visit only non-empty adjacency tiles ----
    bi = _pick_row_block(Np, (128, 64))          # small tiles: e stays in vregs
    bj = _pick_block(Np, (256, 128))
    NI, NJ = Np // bi, Np // bj
    occ = np.asarray((adj.reshape(NI, bi, NJ, bj) != 0).any(axis=(1, 3)))
    max_cols = max(1, int(occ.sum(axis=1).max()))
    col_np = np.zeros((NI, max_cols), np.int32)
    ncol_np = np.zeros((NI,), np.int32)
    for I in range(NI):
        nz = np.nonzero(occ[I])[0].astype(np.int32)
        ncol_np[I] = nz.size
        if nz.size == 0:                         # cannot happen with self loops
            nz = np.array([min(I * bi // bj, NJ - 1)], np.int32)
        col_np[I, :nz.size] = nz
        col_np[I, nz.size:] = nz[-1]             # repeats -> no re-DMA, compute skipped
    col_ids = jnp.asarray(col_np.reshape(-1))
    ncols = jnp.asarray(ncol_np)

    kernel = functools.partial(
        _gatv2_attn_kernel, heads=heads, out_ch=out_ch, d_real=d_real,
        max_cols=max_cols, fuse_act=fuse_act)

    out = pl.pallas_call(
        kernel,
        out_shape=jax.ShapeDtypeStruct((Np, Dp), out_dtype),
        grid_spec=pltpu.PrefetchScalarGridSpec(
            num_scalar_prefetch=2,
            grid=(NI, max_cols),
            in_specs=[
                pl.BlockSpec(memory_space=pltpu.MemorySpace.SMEM),       # att4
                pl.BlockSpec((bi, Dp), lambda i, jj, col, nc: (i, 0)),   # xr
                pl.BlockSpec((bj, Dp),
                             lambda i, jj, col, nc: (col[i * max_cols + jj], 0)),
                pl.BlockSpec((bi, bj),
                             lambda i, jj, col, nc: (i, col[i * max_cols + jj])),
                pl.BlockSpec((1, Dp), lambda i, jj, col, nc: (0, 0)),    # bias
            ],
            out_specs=pl.BlockSpec((bi, Dp), lambda i, jj, col, nc: (i, 0)),
            scratch_shapes=[
                pltpu.VMEM((heads, bi, 1), jnp.float32),    # running max
                pltpu.VMEM((heads, bi, 1), jnp.float32),    # running denom
                pltpu.VMEM((heads, bi, Dp), jnp.float32),   # running weighted sum
            ]),
        compiler_params=pltpu.CompilerParams(
            dimension_semantics=("parallel", "arbitrary")),
    )(col_ids, ncols, att4, xr, xl, adj, bias_row)

    if concat:
        # (Np, Dp) with lanes >= heads*out_ch exactly zero: feeds the next
        # projection directly, no slice/cast pass needed.
        return out
    out = out[:, :d_real].astype(jnp.float32)
    return out.reshape(Np, heads, out_ch).mean(axis=1)


def build_adjacency(edge_index, num_nodes, padded_nodes):
    """int8 dense mask matching GATv2Conv (remove self loops, then add them).
    Padded nodes also get a self loop so their softmax rows stay well-defined."""
    src, dst = edge_index[0], edge_index[1]
    adj = jnp.zeros((padded_nodes, padded_nodes), jnp.int8)
    adj = adj.at[dst, src].set(1)                # edge j -> i lands at adj[i, j]
    eye = jnp.eye(padded_nodes, dtype=jnp.int8)
    adj = jnp.maximum(adj * (1 - eye), eye)
    return adj


def gat_forward(x, edge_index, params):
    """GAT.forward in eval mode (dropout = identity)."""
    # TODO(synk): training-mode dropout (p=0.6) on inputs/attention not implemented.
    shape_b4 = x.shape
    N = x.shape[0]
    Np = _round_up(N, LANE)                      # pad node count to lane multiple
    adj = build_adjacency(edge_index, N, Np)
    x_p = jnp.pad(x, ((0, Np - N), (0, 0))).astype(jnp.float32)

    # conv1 (concat): bias + inter-layer LeakyReLU(0.01) fused into finalize,
    # output kept lane-padded in bf16 so it feeds conv2's projection directly.
    h = gatv2_conv(x_p, adj, params["conv1"], heads=params["in_head"],
                   out_ch=params["hid"], concat=True,
                   fuse_act=True, out_dtype=jnp.bfloat16)
    # conv2 (mean over heads): head-replicated bias fused; mean done in XLA.
    out = gatv2_conv(h, adj, params["conv2"], heads=params["out_head"],
                     out_ch=params["out_feature"], concat=False,
                     fuse_act=False, out_dtype=jnp.float32)
    out = out[:N]
    assert out.shape == shape_b4
    return out


def init_gat_params(key, *, hid, in_head, out_head, in_feature, out_feature):
    """Deterministic synthetic parameters (xavier-normal-style scales, zero biases)."""
    def xavier_normal(k, fan_in, fan_out, shape):
        std = math.sqrt(2.0 / (fan_in + fan_out))
        return std * jax.random.normal(k, shape, dtype=jnp.float32)

    keys = jax.random.split(key, 6)
    conv1 = {
        "Wl": xavier_normal(keys[0], in_feature, in_head * hid,
                            (in_feature, in_head * hid)),
        "Wr": xavier_normal(keys[1], in_feature, in_head * hid,
                            (in_feature, in_head * hid)),
        "bl": jnp.zeros((in_head * hid,), jnp.float32),
        "br": jnp.zeros((in_head * hid,), jnp.float32),
        "att": xavier_normal(keys[2], hid, hid, (in_head, hid)),
        "bias": jnp.zeros((in_head * hid,), jnp.float32),
    }
    f2 = hid * in_head
    conv2 = {
        "Wl": xavier_normal(keys[3], f2, out_head * out_feature,
                            (f2, out_head * out_feature)),
        "Wr": xavier_normal(keys[4], f2, out_head * out_feature,
                            (f2, out_head * out_feature)),
        "bl": jnp.zeros((out_head * out_feature,), jnp.float32),
        "br": jnp.zeros((out_head * out_feature,), jnp.float32),
        "att": xavier_normal(keys[5], out_feature, out_feature,
                             (out_head, out_feature)),
        "bias": jnp.zeros((out_feature,), jnp.float32),
    }
    return {
        "conv1": conv1, "conv2": conv2,
        "hid": hid, "in_head": in_head, "out_head": out_head,
        "in_feature": in_feature, "out_feature": out_feature,
    }


if __name__ == "__main__":
    # Small GAT config: hid=8, in_head=4, out_head=2, in_feature=out_feature=9.
    HID, IN_HEAD, OUT_HEAD = 8, 4, 2
    IN_FEAT = OUT_FEAT = 9
    N = 16  # num_nodes

    key = jax.random.PRNGKey(0)
    k_x, k_p = jax.random.split(key)

    x = jax.random.normal(k_x, (N, IN_FEAT), dtype=jnp.float32)

    # Bidirectional ring graph: edge_index shape (2, 2N), no duplicate edges.
    src = jnp.concatenate([jnp.arange(N), (jnp.arange(N) + 1) % N])
    dst = jnp.concatenate([(jnp.arange(N) + 1) % N, jnp.arange(N)])
    edge_index = jnp.stack([src, dst]).astype(jnp.int32)   # (2, num_edges)

    params = init_gat_params(k_p, hid=HID, in_head=IN_HEAD, out_head=OUT_HEAD,
                             in_feature=IN_FEAT, out_feature=OUT_FEAT)

    out = gat_forward(x, edge_index, params)
    out = jax.block_until_ready(out)
    assert out.shape == x.shape
    assert bool(jnp.all(jnp.isfinite(out)))
    print("KERNEL_OK")
</pallas_src>

<mosaic_0001>
module attributes {stable_mosaic.version = 11 : i64} {
  func.func @_proj_kernel(%arg0: i32, %arg1: memref<64x128xbf16, #tpu.memory_space<vmem>>, %arg2: memref<128x256xbf16, #tpu.memory_space<vmem>>, %arg3: memref<1x256xf32, #tpu.memory_space<vmem>>, %arg4: memref<128x128xf32, #tpu.memory_space<vmem>>, %arg5: memref<64x128xbf16, #tpu.memory_space<vmem>>, %arg6: memref<64x128xf32, #tpu.memory_space<vmem>>) attributes {dimension_semantics = [#tpu.dimension_semantics<parallel>], iteration_bounds = array<i64: 2>, scalar_prefetch = 0 : i64, scratch_operands = 0 : i64, tpu.core_type = #tpu.core_type<tc>, window_params = [{transform_indices = @transform_0, window_bounds = array<i64: 64, 128>}, {pipeline_mode = #tpu.pipeline_mode<synchronous>, transform_indices = @transform_1, window_bounds = array<i64: 128, 256>}, {pipeline_mode = #tpu.pipeline_mode<synchronous>, transform_indices = @transform_2, window_bounds = array<i64: 1, 256>}, {pipeline_mode = #tpu.pipeline_mode<synchronous>, transform_indices = @transform_3, window_bounds = array<i64: 128, 128>}, {transform_indices = @transform_4, window_bounds = array<i64: 64, 128>}, {transform_indices = @transform_5, window_bounds = array<i64: 64, 128>}]} {
    %c0 = arith.constant 0 : index
    %c0_0 = arith.constant 0 : index
    %0 = vector.load %arg1[%c0, %c0_0] : memref<64x128xbf16, #tpu.memory_space<vmem>>, vector<64x128xbf16>
    %c0_1 = arith.constant 0 : index
    %c0_2 = arith.constant 0 : index
    %1 = vector.load %arg2[%c0_1, %c0_2] : memref<128x256xbf16, #tpu.memory_space<vmem>>, vector<128x256xbf16>
    %cst = arith.constant dense<0.000000e+00> : vector<64x256xf32>
    %2 = tpu.matmul %0, %1, %cst {dimension_numbers = #tpu.dot_dimension_numbers<[1], [0], [0], [1], [0, 0, 1, 1], [], []>} : vector<64x128xbf16>, vector<128x256xbf16>, vector<64x256xf32> -> vector<64x256xf32>
    %c0_3 = arith.constant 0 : index
    %c0_4 = arith.constant 0 : index
    %3 = vector.load %arg3[%c0_3, %c0_4] : memref<1x256xf32, #tpu.memory_space<vmem>>, vector<1x256xf32>
    %4 = vector.broadcast %3 : vector<1x256xf32> to vector<64x256xf32>
    %5 = arith.addf %2, %4 : vector<64x256xf32>
    %6 = vector.extract_strided_slice %5 {offsets = [0, 0], sizes = [64, 128], strides = [1, 1]} : vector<64x256xf32> to vector<64x128xf32>
    %7 = vector.extract_strided_slice %5 {offsets = [0, 128], sizes = [64, 128], strides = [1, 1]} : vector<64x256xf32> to vector<64x128xf32>
    %c0_5 = arith.constant 0 : index
    %c0_6 = arith.constant 0 : index
    %8 = vector.load %arg4[%c0_5, %c0_6] : memref<128x128xf32, #tpu.memory_space<vmem>>, vector<128x128xf32>
    %cst_7 = arith.constant dense<0.000000e+00> : vector<64x128xf32>
    %9 = tpu.matmul %6, %8, %cst_7 {dimension_numbers = #tpu.dot_dimension_numbers<[1], [0], [0], [1], [0, 0, 1, 1], [], []>} : vector<64x128xf32>, vector<128x128xf32>, vector<64x128xf32> -> vector<64x128xf32>
    %cst_8 = arith.constant dense<0.000000e+00> : vector<64x128xf32>
    %10 = tpu.matmul %7, %8, %cst_8 {dimension_numbers = #tpu.dot_dimension_numbers<[1], [0], [0], [1], [0, 0, 1, 1], [], []>} : vector<64x128xf32>, vector<128x128xf32>, vector<64x128xf32> -> vector<64x128xf32>
    %11 = arith.addf %6, %9 : vector<64x128xf32>
    %12 = arith.truncf %11 : vector<64x128xf32> to vector<64x128xbf16>
    %c0_9 = arith.constant 0 : index
    %c0_10 = arith.constant 0 : index
    %13 = vector.load %arg5[%c0_9, %c0_10] : memref<64x128xbf16, #tpu.memory_space<vmem>>, vector<64x128xbf16>
    tpu.vector_store %arg5[%c0_9, %c0_10], %12 {strides = array<i32>} : memref<64x128xbf16, #tpu.memory_space<vmem>>, vector<64x128xbf16>,
    %14 = arith.addf %7, %10 : vector<64x128xf32>
    %c0_11 = arith.constant 0 : index
    %c0_12 = arith.constant 0 : index
    %15 = vector.load %arg6[%c0_11, %c0_12] : memref<64x128xf32, #tpu.memory_space<vmem>>, vector<64x128xf32>
    tpu.vector_store %arg6[%c0_11, %c0_12], %14 {strides = array<i32>} : memref<64x128xf32, #tpu.memory_space<vmem>>, vector<64x128xf32>,
    return
  }
  func.func @transform_0(%arg0: i32) -> (i32, i32) {
    %c0_i32 = arith.constant 0 : i32
    %c0_i32_0 = arith.constant 0 : i32
    return %arg0, %c0_i32 : i32, i32
  }
  func.func @transform_1(%arg0: i32) -> (i32, i32) {
    %c0_i32 = arith.constant 0 : i32
    %c0_i32_0 = arith.constant 0 : i32
    %c0_i32_1 = arith.constant 0 : i32
    return %c0_i32, %c0_i32_0 : i32, i32
  }
  func.func @transform_2(%arg0: i32) -> (i32, i32) {
    %c0_i32 = arith.constant 0 : i32
    %c0_i32_0 = arith.constant 0 : i32
    %c0_i32_1 = arith.constant 0 : i32
    return %c0_i32, %c0_i32_0 : i32, i32
  }
  func.func @transform_3(%arg0: i32) -> (i32, i32) {
    %c0_i32 = arith.constant 0 : i32
    %c0_i32_0 = arith.constant 0 : i32
    %c0_i32_1 = arith.constant 0 : i32
    return %c0_i32, %c0_i32_0 : i32, i32
  }
  func.func @transform_4(%arg0: i32) -> (i32, i32) {
    %c0_i32 = arith.constant 0 : i32
    %c0_i32_0 = arith.constant 0 : i32
    return %arg0, %c0_i32 : i32, i32
  }
  func.func @transform_5(%arg0: i32) -> (i32, i32) {
    %c0_i32 = arith.constant 0 : i32
    %c0_i32_0 = arith.constant 0 : i32
    return %arg0, %c0_i32 : i32, i32
  }
}

</mosaic_0001>

<llo_original>
// kernel: tpu_custom_call.1
$region0: #{tpu_custom_call.1}
  #allocation0 [shape = 'u32[]', space=smem, size = 0x4, offset = 0x4, fixed_abs, tag = 'smem constant byte address 0x4 - core index']
  #allocation1 [shape = 'u32[144,128]{1,0:T(1,128)}', space=vmem, size = 0x12000, scoped, tag = 'internal scratch']
  %s0 = inlined_call_operand.hbm [shape: bf16[128,128], index: 0, kind: input, shape index: {}]
  %s1 = inlined_call_operand.hbm [shape: bf16[128,256], index: 1, kind: input, shape index: {}]
  %s2 = inlined_call_operand.vmem [shape: f32[1,256], index: 2, kind: input, shape index: {}]
  %s3 = inlined_call_operand.hbm [shape: f32[128,128], index: 3, kind: input, shape index: {}]
  %s4 = inlined_call_operand.hbm [shape: bf16[128,128], index: 4, kind: output, shape index: {0}]
  %s5 = inlined_call_operand.hbm [shape: f32[128,128], index: 5, kind: output, shape index: {1}]
  %6 = xla_tuple %s4, %s5
  %s7 = sld [smem:[#allocation0]]
  $region69: #{tpu_custom_call.1} parent=0
    _
  %s9 = ssub.s32 1, %s7
  %s10 = scalar_select 0, %s9, %s7
  $region1: #{tpu_custom_call.1} parent=0
    #allocation2 [shape = 'u8[32768]{0}', space=vmem, size = 0x8000, scoped, tag = 'input window, operand 0']
    #allocation3 [shape = 's32[2]{0}', space=sflag, size = 0x8, scoped, tag = 'scoped memory for tpu_custom_call.1']
    #allocation4 [shape = 's32[2]{0}', space=sflag, size = 0x8, scoped, tag = 'scoped memory for tpu_custom_call.1']
    #allocation5 [shape = 'u8[65536]{0}', space=vmem, size = 0x10000, scoped, tag = 'input window, operand 1, single buffered']
    #allocation6 [shape = 's32[1]{0}', space=sflag, size = 0x4, scoped, tag = 'scoped memory for tpu_custom_call.1']
    #allocation7 [shape = 'u8[65536]{0}', space=vmem, size = 0x10000, scoped, tag = 'input window, operand 3, single buffered']
    #allocation8 [shape = 'u8[32768]{0}', space=vmem, size = 0x8000, scoped, tag = 'output window, operand 0']
    #allocation9 [shape = 'u8[65536]{0}', space=vmem, size = 0x10000, scoped, tag = 'output window, operand 1']
    #allocation10 [shape = 's32[2]{0}', space=sflag, size = 0x8, scoped, tag = 'scoped memory for tpu_custom_call.1']
    %11 = vsyncpa [#allocation3], 0
    %s12 = scalar_lea.sflag [#allocation3], 1
    %13 = vsyncpa %s12, 0
    %14 = vsyncpa [#allocation6], 0
    %15 = vsyncpa [#allocation4], 0
    %s16 = scalar_lea.sflag [#allocation4], 1
    %17 = vsyncpa %s16, 0
    %18 = vsyncpa [#allocation10], 0
    %s19 = scalar_lea.sflag [#allocation10], 1
    %20 = vsyncpa %s19, 0
    loop: start=0, step=1, limit=4
    $region2: #{tpu_custom_call.1} parent=1 // loop_pre_header
      _
    $region3: #{tpu_custom_call.1} parent=1 // loop_header
      %s22 = sphi 0, %s26
      %p23 = scmp.ge.s32.totalorder %s22, 4
      %s32 = sphi 0, %s34
      %s35 = sphi 0, %s32
      %s36 = sphi 0, %s35
      %s52 = sphi 0, %s36
      %s56 = sphi 0, %s56
      %s58 = sphi 0, %s56
      %s59 = sphi 0, %s58
      %s73 = sphi 0, %s59
      %s77 = sphi 0, %s77
      %s79 = sphi 0, %s77
      %s80 = sphi 0, %s79
      %s94 = sphi 0, %s80
      %s98 = sphi 0, %s98
      %s100 = sphi 0, %s98
      %s101 = sphi 0, %s100
      %s115 = sphi 0, %s101
      %s121 = sphi 0, %s123
      %s124 = sphi 0, %s121
      %s125 = sphi 0, %s124
      %s141 = sphi 0, %s125
      %s147 = sphi 0, %s149
      %s150 = sphi 0, %s147
      %s151 = sphi 0, %s150
      %s167 = sphi 0, %s151
    $region4: #{tpu_custom_call.1} parent=1 // loop_header_branch
      %25 = sbr.rel (%p23) target = $region8
    $region5: #{tpu_custom_call.1} parent=1 // loop_body
      %s27 = ssub.s32 %s22, 1
      %s28 = ssub.s32 %s22, 2
      %s29 = sadd.s32 %s22, 1
      %s30 = ssub.s32 %s22, %s29
      %p31 = scmp.eq.s32.totalorder %s30, 0
      %s33 = sadd.s32 %s32, 1
      %s34 = scalar_select %p31, %s32, %s33
      %p37 = pneg %p31
      %p38 = scmp.eq.s32.totalorder %s22, 1
      %p39 = por %p37, %p38
      %p40 = scmp.ne.s32.totalorder %s32, %s35
      %p41 = scmp.eq.s32.totalorder %s22, 0
      %p42 = por %p40, %p41
      %p43 = scmp.ne.s32.totalorder %s32, %s35
      %p44 = scmp.eq.s32.totalorder %s27, 1
      %p45 = por %p43, %p44
      %p46 = scmp.ne.s32.totalorder %s35, %s36
      %p47 = scmp.eq.s32.totalorder %s27, 0
      %p48 = por %p46, %p47
      %p49 = scmp.ne.s32.totalorder %s35, %s36
      %p50 = scmp.eq.s32.totalorder %s28, 1
      %p51 = por %p49, %p50
      %p53 = scmp.ne.s32.totalorder %s36, %s52
      %p54 = scmp.eq.s32.totalorder %s28, 0
      %p55 = por %p53, %p54
      %s57 = sadd.s32 %s56, 1
      %p60 = scmp.eq.s32.totalorder %s22, 1
      %p61 = scmp.ne.s32.totalorder %s56, %s58
      %p62 = scmp.eq.s32.totalorder %s22, 0
      %p63 = por %p61, %p62
      %p64 = scmp.ne.s32.totalorder %s56, %s58
      %p65 = scmp.eq.s32.totalorder %s27, 1
      %p66 = por %p64, %p65
      %p67 = scmp.ne.s32.totalorder %s58, %s59
      %p68 = scmp.eq.s32.totalorder %s27, 0
      %p69 = por %p67, %p68
      %p70 = scmp.ne.s32.totalorder %s58, %s59
      %p71 = scmp.eq.s32.totalorder %s28, 1
      %p72 = por %p70, %p71
      %p74 = scmp.ne.s32.totalorder %s59, %s73
      %p75 = scmp.eq.s32.totalorder %s28, 0
      %p76 = por %p74, %p75
      %s78 = sadd.s32 %s77, 1
      %p81 = scmp.eq.s32.totalorder %s22, 1
      %p82 = scmp.ne.s32.totalorder %s77, %s79
      %p83 = scmp.eq.s32.totalorder %s22, 0
      %p84 = por %p82, %p83
      %p85 = scmp.ne.s32.totalorder %s77, %s79
      %p86 = scmp.eq.s32.totalorder %s27, 1
      %p87 = por %p85, %p86
      %p88 = scmp.ne.s32.totalorder %s79, %s80
      %p89 = scmp.eq.s32.totalorder %s27, 0
      %p90 = por %p88, %p89
      %p91 = scmp.ne.s32.totalorder %s79, %s80
      %p92 = scmp.eq.s32.totalorder %s28, 1
      %p93 = por %p91, %p92
      %p95 = scmp.ne.s32.totalorder %s80, %s94
      %p96 = scmp.eq.s32.totalorder %s28, 0
      %p97 = por %p95, %p96
      %s99 = sadd.s32 %s98, 1
      %p102 = scmp.eq.s32.totalorder %s22, 1
      %p103 = scmp.ne.s32.totalorder %s98, %s100
      %p104 = scmp.eq.s32.totalorder %s22, 0
      %p105 = por %p103, %p104
      %p106 = scmp.ne.s32.totalorder %s98, %s100
      %p107 = scmp.eq.s32.totalorder %s27, 1
      %p108 = por %p106, %p107
      %p109 = scmp.ne.s32.totalorder %s100, %s101
      %p110 = scmp.eq.s32.totalorder %s27, 0
      %p111 = por %p109, %p110
      %p112 = scmp.ne.s32.totalorder %s100, %s101
      %p113 = scmp.eq.s32.totalorder %s28, 1
      %p114 = por %p112, %p113
      %p116 = scmp.ne.s32.totalorder %s101, %s115
      %p117 = scmp.eq.s32.totalorder %s28, 0
      %p118 = por %p116, %p117
      %s119 = ssub.s32 %s22, %s29
      %p120 = scmp.eq.s32.totalorder %s119, 0
      %s122 = sadd.s32 %s121, 1
      %s123 = scalar_select %p120, %s121, %s122
      %p126 = pneg %p120
      %p127 = scmp.eq.s32.totalorder %s22, 1
      %p128 = por %p126, %p127
      %p129 = scmp.ne.s32.totalorder %s121, %s124
      %p130 = scmp.eq.s32.totalorder %s22, 0
      %p131 = por %p129, %p130
      %p132 = scmp.ne.s32.totalorder %s121, %s124
      %p133 = scmp.eq.s32.totalorder %s27, 1
      %p134 = por %p132, %p133
      %p135 = scmp.ne.s32.totalorder %s124, %s125
      %p136 = scmp.eq.s32.totalorder %s27, 0
      %p137 = por %p135, %p136
      %p138 = scmp.ne.s32.totalorder %s124, %s125
      %p139 = scmp.eq.s32.totalorder %s28, 1
      %p140 = por %p138, %p139
      %p142 = scmp.ne.s32.totalorder %s125, %s141
      %p143 = scmp.eq.s32.totalorder %s28, 0
      %p144 = por %p142, %p143
      %s145 = ssub.s32 %s22, %s29
      %p146 = scmp.eq.s32.totalorder %s145, 0
      %s148 = sadd.s32 %s147, 1
      %s149 = scalar_select %p146, %s147, %s148
      %p152 = pneg %p146
      %p153 = scmp.eq.s32.totalorder %s22, 1
      %p154 = por %p152, %p153
      %p155 = scmp.ne.s32.totalorder %s147, %s150
      %p156 = scmp.eq.s32.totalorder %s22, 0
      %p157 = por %p155, %p156
      %p158 = scmp.ne.s32.totalorder %s147, %s150
      %p159 = scmp.eq.s32.totalorder %s27, 1
      %p160 = por %p158, %p159
      %p161 = scmp.ne.s32.totalorder %s150, %s151
      %p162 = scmp.eq.s32.totalorder %s27, 0
      %p163 = por %p161, %p162
      %p164 = scmp.ne.s32.totalorder %s150, %s151
      %p165 = scmp.eq.s32.totalorder %s28, 1
      %p166 = por %p164, %p165
      %p168 = scmp.ne.s32.totalorder %s151, %s167
      %p169 = scmp.eq.s32.totalorder %s28, 0
      %p170 = por %p168, %p169
      %p171 = scmp.le.s32.totalorder 1, %s22
      %p172 = scmp.lt.s32.totalorder %s22, 3
      %p173 = pnand %p171, %p172
      %p174 = pneg %p173
      // Predicated region
      $region9: #{tpu_custom_call.1} parent=5 // pred_check
        _
      $region10: #{tpu_custom_call.1} parent=5 // pred_check_branch
        %176 = sbr.rel (%p173) target = $region12
      $region11: #{tpu_custom_call.1} parent=5 // pred_region
        %s177 = ssub.s32 %s22, 1
        // Predicated region
        $region13: #{tpu_custom_call.1} parent=11 // pred_check
          %p178 = pneg %p69
        $region14: #{tpu_custom_call.1} parent=11 // pred_check_branch
          %180 = sbr.rel (%p178) target = $region16
        $region15: #{tpu_custom_call.1} parent=11 // pred_region
          %s182 = ssub.s32 2048, 2048
          %183 = vsyncadd [#allocation6], %s182
          %s184 = sshll.u32 [#allocation5], 4
          %s185 = int_to_ptr.vmem [resolvable:$true] %s184
          %190 = dma.hbm_to_vmem [thread:$0]  %s1, 2048, %s185, [#allocation6], 128, 128, 8
        $region16: #{tpu_custom_call.1} parent=11 // pred_fallthru
          _
        // Predicated region
        $region17: #{tpu_custom_call.1} parent=11 // pred_check
          %p191 = pneg %p90
        $region18: #{tpu_custom_call.1} parent=11 // pred_check_branch
          %193 = sbr.rel (%p191) target = $region20
        $region19: #{tpu_custom_call.1} parent=11 // pred_region
          _
        $region20: #{tpu_custom_call.1} parent=11 // pred_fallthru
          _
        // Predicated region
        $region21: #{tpu_custom_call.1} parent=11 // pred_check
          %p194 = pneg %p111
        $region22: #{tpu_custom_call.1} parent=11 // pred_check_branch
          %196 = sbr.rel (%p194) target = $region24
        $region23: #{tpu_custom_call.1} parent=11 // pred_region
          %s198 = ssub.s32 2048, 2048
          %199 = vsyncadd [#allocation6], %s198
          %s200 = sshll.u32 [#allocation7], 4
          %s201 = int_to_ptr.vmem [resolvable:$true] %s200
          %206 = dma.hbm_to_vmem [thread:$0]  %s3, 2048, %s201, [#allocation6], 128, 128, 8
        $region24: #{tpu_custom_call.1} parent=11 // pred_fallthru
          _
      $region12: #{tpu_custom_call.1} parent=5 // pred_fallthru
        _
      %p207 = scmp.lt.s32.totalorder %s22, 2
      // Predicated region
      $region25: #{tpu_custom_call.1} parent=5 // pred_check
        %p208 = pneg %p207
      $region26: #{tpu_custom_call.1} parent=5 // pred_check_branch
        %210 = sbr.rel (%p208) target = $region28
      $region27: #{tpu_custom_call.1} parent=5 // pred_region
        // Predicated region
        $region29: #{tpu_custom_call.1} parent=27 // pred_check
          %p211 = pneg %p42
        $region30: #{tpu_custom_call.1} parent=27 // pred_check_branch
          %213 = sbr.rel (%p211) target = $region32
        $region31: #{tpu_custom_call.1} parent=27 // pred_region
          %s214 = sand.u32 %s32, 1
          %s215 = scalar_lea.sflag [#allocation3], %s214
          %s216 = sand.u32 %s32, 1
          %s217 = smul.addr %s216, 32
          %s218 = scalar_lea.vmem [#allocation2], %s217
          %s219 = smul.u32 8, %s22
          %s221 = ssub.s32 512, 512
          %222 = vsyncadd %s215, %s221
          %s223 = smul.addr %s219, 64
          %s224 = scalar_lea.hbm %s0, %s223
          %s225 = sshll.u32 %s218, 4
          %s226 = int_to_ptr.vmem [resolvable:$true] %s225
          %231 = dma.hbm_to_vmem [thread:$0]  %s224, 512, %s226, %s215, 64, 64, 4
        $region32: #{tpu_custom_call.1} parent=27 // pred_fallthru
          _
      $region28: #{tpu_custom_call.1} parent=5 // pred_fallthru
        _
      %p232 = scmp.le.s32.totalorder 1, %s22
      %p233 = scmp.lt.s32.totalorder %s22, 3
      %p234 = pnand %p232, %p233
      %p235 = pneg %p234
      // Predicated region
      $region33: #{tpu_custom_call.1} parent=5 // pred_check
        _
      $region34: #{tpu_custom_call.1} parent=5 // pred_check_branch
        %237 = sbr.rel (%p234) target = $region36
      $region35: #{tpu_custom_call.1} parent=5 // pred_region
        %s238 = ssub.s32 %s22, 1
        %s239 = sand.u32 %s35, 1
        %s240 = scalar_lea.sflag [#allocation3], %s239
        %s241 = sand.u32 %s35, 1
        %s242 = smul.addr %s241, 32
        %s243 = scalar_lea.vmem [#allocation2], %s242
        // Predicated region
        $region37: #{tpu_custom_call.1} parent=35 // pred_check
          %p244 = pneg %p48
        $region38: #{tpu_custom_call.1} parent=35 // pred_check_branch
          %246 = sbr.rel (%p244) target = $region40
        $region39: #{tpu_custom_call.1} parent=35 // pred_region
          %247 = dma.done %s240, 512
        $region40: #{tpu_custom_call.1} parent=35 // pred_fallthru
          _
        // Predicated region
        $region41: #{tpu_custom_call.1} parent=35 // pred_check
          %p248 = pneg %p69
        $region42: #{tpu_custom_call.1} parent=35 // pred_check_branch
          %250 = sbr.rel (%p248) target = $region44
        $region43: #{tpu_custom_call.1} parent=35 // pred_region
          %251 = dma.done [#allocation6], 2048
        $region44: #{tpu_custom_call.1} parent=35 // pred_fallthru
          _
        // Predicated region
        $region45: #{tpu_custom_call.1} parent=35 // pred_check
          %p252 = pneg %p111
        $region46: #{tpu_custom_call.1} parent=35 // pred_check_branch
          %254 = sbr.rel (%p252) target = $region48
        $region47: #{tpu_custom_call.1} parent=35 // pred_region
          %255 = dma.done [#allocation6], 2048
        $region48: #{tpu_custom_call.1} parent=35 // pred_fallthru
          _
        %s256 = sand.u32 %s35, 1
        %s257 = scalar_lea.sflag [#allocation3], %s256
        %s258 = sand.u32 %s35, 1
        %s259 = smul.addr %s258, 32
        %s260 = scalar_lea.vmem [#allocation2], %s259
        %p261 = pneg %p48
        %p262 = pneg %p45
        %p263 = pneg %p69
        %p264 = pneg %p66
        %p265 = pneg %p90
        %p266 = pneg %p87
        %p267 = pneg %p111
        %p268 = pneg %p108
        %p269 = pneg %p137
        %p270 = pneg %p134
        %s271 = sand.u32 %s124, 1
        %s272 = scalar_lea.sflag [#allocation4], %s271
        %s273 = sand.u32 %s124, 1
        %s274 = smul.addr %s273, 32
        %s275 = scalar_lea.vmem [#allocation8], %s274
        %p276 = pneg %p163
        %p277 = pneg %p160
        %s278 = sand.u32 %s150, 1
        %s279 = scalar_lea.sflag [#allocation10], %s278
        %s280 = sand.u32 %s150, 1
        %s281 = smul.addr %s280, 64
        %s282 = scalar_lea.vmem [#allocation9], %s281
        %s283 = smul.u32 8, %s27
        %s284 = smul.u32 8, %s27
        %s285 = smul.u32 8, %s27
        %v287 = vld [vmem:[%s243] sm:$0xf]
        %v288 = vld [vmem:[%s243 + $0x4] sm:$0xf]
        %v289 = vld [vmem:[%s243 + $0x8] sm:$0xf]
        %v290 = vld [vmem:[%s243 + $0xc] sm:$0xf]
        %v291 = vld [vmem:[%s243 + $0x10] sm:$0xf]
        %v292 = vld [vmem:[%s243 + $0x14] sm:$0xf]
        %v293 = vld [vmem:[%s243 + $0x18] sm:$0xf]
        %v294 = vld [vmem:[%s243 + $0x1c] sm:$0xf]
        %v295 = vld [vmem:[#allocation5] sm:$0xff]
        %v296 = vld [vmem:[#allocation5 + $0x8] sm:$0xff]
        %v297 = vld [vmem:[#allocation5 + $0x10] sm:$0xff]
        %v298 = vld [vmem:[#allocation5 + $0x18] sm:$0xff]
        %v299 = vld [vmem:[#allocation5 + $0x20] sm:$0xff]
        %v300 = vld [vmem:[#allocation5 + $0x28] sm:$0xff]
        %v301 = vld [vmem:[#allocation5 + $0x30] sm:$0xff]
        %v302 = vld [vmem:[#allocation5 + $0x38] sm:$0xff]
        %v303 = vld [vmem:[#allocation5 + $0x40] sm:$0xff]
        %v304 = vld [vmem:[#allocation5 + $0x48] sm:$0xff]
        %v305 = vld [vmem:[#allocation5 + $0x50] sm:$0xff]
        %v306 = vld [vmem:[#allocation5 + $0x58] sm:$0xff]
        %v307 = vld [vmem:[#allocation5 + $0x60] sm:$0xff]
        %v308 = vld [vmem:[#allocation5 + $0x68] sm:$0xff]
        %v309 = vld [vmem:[#allocation5 + $0x70] sm:$0xff]
        %v310 = vld [vmem:[#allocation5 + $0x78] sm:$0xff]
        %v311 = vld [vmem:[%s2] sm:$0x3]
        %v313 = vlaneseq
        %v314 = vshrl.u32 %v313, 7
        %v315 = vsub.s32 0, %v314
        %v316 = vrot.slane %v311, %v315
        %v317 = vlaneseq
        %v318 = vshrl.u32 %v317, 7
        %v319 = vsub.s32 1, %v318
        %v320 = vrot.slane %v311, %v319
        %v331 = vunpack.c.l.b16 %v287
        %v332 = vunpack.c.l.b16 %v288
        %v333 = vunpack.c.l.b16 %v289
        %v334 = vunpack.c.l.b16 %v290
        %v335 = vunpack.c.l.b16 %v291
        %v336 = vunpack.c.l.b16 %v292
        %v337 = vunpack.c.l.b16 %v293
        %v338 = vunpack.c.l.b16 %v294
        %v339 = vpack.c.b16 %v332, %v331
        %v340 = vpack.c.b16 %v334, %v333
        %v341 = vpack.c.b16 %v336, %v335
        %v342 = vpack.c.b16 %v338, %v337
        %v363 = vunpack.c.l.b16 %v295
        %v364 = vunpack.c.h.b16 %v295
        %v365 = vunpack.c.l.b16 %v296
        %v366 = vunpack.c.h.b16 %v296
        %v367 = vunpack.c.l.b16 %v297
        %v368 = vunpack.c.h.b16 %v297
        %v369 = vunpack.c.l.b16 %v298
        %v370 = vunpack.c.h.b16 %v298
        %v371 = vunpack.c.l.b16 %v299
        %v372 = vunpack.c.h.b16 %v299
        %v373 = vunpack.c.l.b16 %v300
        %v374 = vunpack.c.h.b16 %v300
        %v375 = vunpack.c.l.b16 %v301
        %v376 = vunpack.c.h.b16 %v301
        %v377 = vunpack.c.l.b16 %v302
        %v378 = vunpack.c.h.b16 %v302
        %v379 = vunpack.c.l.b16 %v303
        %v380 = vunpack.c.h.b16 %v303
        %v381 = vunpack.c.l.b16 %v304
        %v382 = vunpack.c.h.b16 %v304
        %v383 = vunpack.c.l.b16 %v305
        %v384 = vunpack.c.h.b16 %v305
        %v385 = vunpack.c.l.b16 %v306
        %v386 = vunpack.c.h.b16 %v306
        %v387 = vunpack.c.l.b16 %v307
        %v388 = vunpack.c.h.b16 %v307
        %v389 = vunpack.c.l.b16 %v308
        %v390 = vunpack.c.h.b16 %v308
        %v391 = vunpack.c.l.b16 %v309
        %v392 = vunpack.c.h.b16 %v309
        %v393 = vunpack.c.l.b16 %v310
        %v394 = vunpack.c.h.b16 %v310
        %v395 = vpack.c.b16 %v365, %v363
        %v396 = vpack.c.b16 %v366, %v364
        %v397 = vpack.c.b16 %v369, %v367
        %v398 = vpack.c.b16 %v370, %v368
        %v399 = vpack.c.b16 %v373, %v371
        %v400 = vpack.c.b16 %v374, %v372
        %v401 = vpack.c.b16 %v377, %v375
        %v402 = vpack.c.b16 %v378, %v376
        %v403 = vpack.c.b16 %v381, %v379
        %v404 = vpack.c.b16 %v382, %v380
        %v405 = vpack.c.b16 %v385, %v383
        %v406 = vpack.c.b16 %v386, %v384
        %v407 = vpack.c.b16 %v389, %v387
        %v408 = vpack.c.b16 %v390, %v388
        %v409 = vpack.c.b16 %v393, %v391
        %v410 = vpack.c.b16 %v394, %v392
        %427 = vmatprep.subr.bf16.mxu0 %v396
        %428 = vmatpush1.bf16.msra.mxu0 %v395
        %429 = vmatprep.subr.bf16.mxu0 %v398
        %430 = vmatpush1.bf16.msra.mxu0 %v397
        %431 = vmatprep.subr.bf16.mxu0 %v400
        %432 = vmatpush1.bf16.msra.mxu0 %v399
        %433 = vmatprep.subr.bf16.mxu0 %v402
        %434 = vmatpush1.bf16.msra.mxu0 %v401
        %435 = vmatprep.subr.bf16.mxu0 %v404
        %436 = vmatpush1.bf16.msra.mxu0 %v403
        %437 = vmatprep.subr.bf16.mxu0 %v406
        %438 = vmatpush1.bf16.msra.mxu0 %v405
        %439 = vmatprep.subr.bf16.mxu0 %v408
        %440 = vmatpush1.bf16.msra.mxu0 %v407
        %441 = vmatprep.subr.bf16.mxu0 %v410
        %442 = vmatpush1.bf16.msra.mxu0 %v409
        %443 = vmatprep.subr.bf16.mxu0 0
        %444 = vmatpush1.bf16.msra.mxu0 0
        %445 = vmatprep.subr.bf16.mxu0 0
        %446 = vmatpush1.bf16.msra.mxu0 0
        %447 = vmatprep.subr.bf16.mxu0 0
        %448 = vmatpush1.bf16.msra.mxu0 0
        %449 = vmatprep.subr.bf16.mxu0 0
        %450 = vmatpush1.bf16.msra.mxu0 0
        %451 = vmatprep.subr.bf16.mxu0 0
        %452 = vmatpush1.bf16.msra.mxu0 0
        %453 = vmatprep.subr.bf16.mxu0 0
        %454 = vmatpush1.bf16.msra.mxu0 0
        %455 = vmatprep.subr.bf16.mxu0 0
        %456 = vmatpush1.bf16.msra.mxu0 0
        %457 = vmatprep.subr.bf16.mxu0 0
        %458 = vmatpush1.bf16.msra.mxu0 0
        %459 = vmatprep.mubr.bf16.mxu0 0
        %460 = vmatmul.mubr.bf16.gmra.mrb[0].mxu0 %v339
        %v461 = vpop.f32.mrb[0].mxu0
        %v462 = vadd.f32 %v316, %v461
        %v463 = vpop.f32.mrb[0].mxu0
        %v464 = vadd.f32 %v320, %v463
        %v465 = vpop.f32.mrb[0].mxu0
        %v466 = vadd.f32 %v316, %v465
        %v467 = vpop.f32.mrb[0].mxu0
        %v468 = vadd.f32 %v320, %v467
        %469 = vmatprep.mubr.bf16.mxu0 0
        %470 = vmatmul.mubr.bf16.gmra.mrb[0].mxu0 %v340
        %v471 = vpop.f32.mrb[0].mxu0
        %v472 = vadd.f32 %v316, %v471
        %v473 = vpop.f32.mrb[0].mxu0
        %v474 = vadd.f32 %v320, %v473
        %v475 = vpop.f32.mrb[0].mxu0
        %v476 = vadd.f32 %v316, %v475
        %v477 = vpop.f32.mrb[0].mxu0
        %v478 = vadd.f32 %v320, %v477
        %479 = vmatprep.mubr.bf16.mxu0 0
        %480 = vmatmul.mubr.bf16.gmra.mrb[0].mxu0 %v341
        %v481 = vpop.f32.mrb[0].mxu0
        %v482 = vadd.f32 %v316, %v481
        %v483 = vpop.f32.mrb[0].mxu0
        %v484 = vadd.f32 %v320, %v483
        %v485 = vpop.f32.mrb[0].mxu0
        %v486 = vadd.f32 %v316, %v485
        %v487 = vpop.f32.mrb[0].mxu0
        %v488 = vadd.f32 %v320, %v487
        %489 = vmatprep.mubr.bf16.mxu0 0
        %490 = vmatmul.mubr.bf16.gmra.mrb[0].mxu0 %v342
        %v491 = vpop.f32.mrb[0].mxu0
        %v492 = vadd.f32 %v316, %v491
        %v493 = vpop.f32.mrb[0].mxu0
        %v494 = vadd.f32 %v320, %v493
        %v495 = vpop.f32.mrb[0].mxu0
        %v496 = vadd.f32 %v316, %v495
        %v497 = vpop.f32.mrb[0].mxu0
        %v498 = vadd.f32 %v320, %v497
        %499 = vdwg.mxu0
        %v500 = vld [vmem:[#allocation7] sm:$0xff]
        %v501 = vld [vmem:[#allocation7 + $0x8] sm:$0xff]
        %v502 = vld [vmem:[#allocation7 + $0x10] sm:$0xff]
        %v503 = vld [vmem:[#allocation7 + $0x18] sm:$0xff]
        %v504 = vld [vmem:[#allocation7 + $0x20] sm:$0xff]
        %v505 = vld [vmem:[#allocation7 + $0x28] sm:$0xff]
        %v506 = vld [vmem:[#allocation7 + $0x30] sm:$0xff]
        %v507 = vld [vmem:[#allocation7 + $0x38] sm:$0xff]
        %v508 = vld [vmem:[#allocation7 + $0x40] sm:$0xff]
        %v509 = vld [vmem:[#allocation7 + $0x48] sm:$0xff]
        %v510 = vld [vmem:[#allocation7 + $0x50] sm:$0xff]
        %v511 = vld [vmem:[#allocation7 + $0x58] sm:$0xff]
        %v512 = vld [vmem:[#allocation7 + $0x60] sm:$0xff]
        %v513 = vld [vmem:[#allocation7 + $0x68] sm:$0xff]
        %v514 = vld [vmem:[#allocation7 + $0x70] sm:$0xff]
        %v515 = vld [vmem:[#allocation7 + $0x78] sm:$0xff]
        %516 = vmatprep.subr.mxu0 0.0
        %517 = vmatpush1.msra.mxu0 %v500
        %518 = vmatprep.subr.mxu0 0.0
        %519 = vmatpush1.msra.mxu0 %v501
        %520 = vmatprep.subr.mxu0 0.0
        %521 = vmatpush1.msra.mxu0 %v502
        %522 = vmatprep.subr.mxu0 0.0
        %523 = vmatpush1.msra.mxu0 %v503
        %524 = vmatprep.subr.mxu0 0.0
        %525 = vmatpush1.msra.mxu0 %v504
        %526 = vmatprep.subr.mxu0 0.0
        %527 = vmatpush1.msra.mxu0 %v505
        %528 = vmatprep.subr.mxu0 0.0
        %529 = vmatpush1.msra.mxu0 %v506
        %530 = vmatprep.subr.mxu0 0.0
        %531 = vmatpush1.msra.mxu0 %v507
        %532 = vmatprep.subr.mxu0 0.0
        %533 = vmatpush1.msra.mxu0 %v508
        %534 = vmatprep.subr.mxu0 0.0
        %535 = vmatpush1.msra.mxu0 %v509
        %536 = vmatprep.subr.mxu0 0.0
        %537 = vmatpush1.msra.mxu0 %v510
        %538 = vmatprep.subr.mxu0 0.0
        %539 = vmatpush1.msra.mxu0 %v511
        %540 = vmatprep.subr.mxu0 0.0
        %541 = vmatpush1.msra.mxu0 %v512
        %542 = vmatprep.subr.mxu0 0.0
        %543 = vmatpush1.msra.mxu0 %v513
        %544 = vmatprep.subr.mxu0 0.0
        %545 = vmatpush1.msra.mxu0 %v514
        %546 = vmatprep.subr.mxu0 0.0
        %547 = vmatpush1.msra.mxu0 %v515
        %548 = vmatprep.subr.mxu0 0.0
        %549 = vmatpush1.msra.mxu0 0.0
        %550 = vmatprep.subr.mxu0 0.0
        %551 = vmatpush1.msra.mxu0 0.0
        %552 = vmatprep.subr.mxu0 0.0
        %553 = vmatpush1.msra.mxu0 0.0
        %554 = vmatprep.subr.mxu0 0.0
        %555 = vmatpush1.msra.mxu0 0.0
        %556 = vmatprep.subr.mxu0 0.0
        %557 = vmatpush1.msra.mxu0 0.0
        %558 = vmatprep.subr.mxu0 0.0
        %559 = vmatpush1.msra.mxu0 0.0
        %560 = vmatprep.subr.mxu0 0.0
        %561 = vmatpush1.msra.mxu0 0.0
        %562 = vmatprep.subr.mxu0 0.0
        %563 = vmatpush1.msra.mxu0 0.0
        %564 = vmatprep.subr.mxu0 0.0
        %565 = vmatpush1.msra.mxu0 0.0
        %566 = vmatprep.subr.mxu0 0.0
        %567 = vmatpush1.msra.mxu0 0.0
        %568 = vmatprep.subr.mxu0 0.0
        %569 = vmatpush1.msra.mxu0 0.0
        %570 = vmatprep.subr.mxu0 0.0
        %571 = vmatpush1.msra.mxu0 0.0
        %572 = vmatprep.subr.mxu0 0.0
        %573 = vmatpush1.msra.mxu0 0.0
        %574 = vmatprep.subr.mxu0 0.0
        %575 = vmatpush1.msra.mxu0 0.0
        %576 = vmatprep.subr.mxu0 0.0
        %577 = vmatpush1.msra.mxu0 0.0
        %578 = vmatprep.subr.mxu0 0.0
        %579 = vmatpush1.msra.mxu0 0.0
        %580 = vmatprep.mubr.f32.mxu0 0.0
        %581 = vmatmul.mubr.f32.gmra.mrb[0].mxu0 %v462
        %v582 = vpop.f32.mrb[0].mxu0
        %v583 = vadd.f32 0.0, %v582
        %v584 = vpop.f32.mrb[0].mxu0
        %585 = vmatprep.mubr.f32.mxu0 0.0
        %586 = vmatmul.mubr.f32.gmra.mrb[0].mxu0 %v466
        %v587 = vpop.f32.mrb[0].mxu0
        %v588 = vadd.f32 0.0, %v587
        %v589 = vpop.f32.mrb[0].mxu0
        %590 = vmatprep.mubr.f32.mxu0 0.0
        %591 = vmatmul.mubr.f32.gmra.mrb[0].mxu0 %v472
        %v592 = vpop.f32.mrb[0].mxu0
        %v593 = vadd.f32 0.0, %v592
        %v594 = vpop.f32.mrb[0].mxu0
        %595 = vmatprep.mubr.f32.mxu0 0.0
        %596 = vmatmul.mubr.f32.gmra.mrb[0].mxu0 %v476
        %v597 = vpop.f32.mrb[0].mxu0
        %v598 = vadd.f32 0.0, %v597
        %v599 = vpop.f32.mrb[0].mxu0
        %600 = vmatprep.mubr.f32.mxu0 0.0
        %601 = vmatmul.mubr.f32.gmra.mrb[0].mxu0 %v482
        %v602 = vpop.f32.mrb[0].mxu0
        %v603 = vadd.f32 0.0, %v602
        %v604 = vpop.f32.mrb[0].mxu0
        %605 = vmatprep.mubr.f32.mxu0 0.0
        %606 = vmatmul.mubr.f32.gmra.mrb[0].mxu0 %v486
        %v607 = vpop.f32.mrb[0].mxu0
        %v608 = vadd.f32 0.0, %v607
        %v609 = vpop.f32.mrb[0].mxu0
        %610 = vmatprep.mubr.f32.mxu0 0.0
        %611 = vmatmul.mubr.f32.gmra.mrb[0].mxu0 %v492
        %v612 = vpop.f32.mrb[0].mxu0
        %v613 = vadd.f32 0.0, %v612
        %v614 = vpop.f32.mrb[0].mxu0
        %615 = vmatprep.mubr.f32.mxu0 0.0
        %616 = vmatmul.mubr.f32.gmra.mrb[0].mxu0 %v496
        %v617 = vpop.f32.mrb[0].mxu0
        %v618 = vadd.f32 0.0, %v617
        %v619 = vpop.f32.mrb[0].mxu0
        %620 = vdwg.mxu0
        %621 = vmatprep.subr.mxu0 0.0
        %622 = vmatpush1.msra.mxu0 %v500
        %623 = vmatprep.subr.mxu0 0.0
        %624 = vmatpush1.msra.mxu0 %v501
        %625 = vmatprep.subr.mxu0 0.0
        %626 = vmatpush1.msra.mxu0 %v502
        %627 = vmatprep.subr.mxu0 0.0
        %628 = vmatpush1.msra.mxu0 %v503
        %629 = vmatprep.subr.mxu0 0.0
        %630 = vmatpush1.msra.mxu0 %v504
        %631 = vmatprep.subr.mxu0 0.0
        %632 = vmatpush1.msra.mxu0 %v505
        %633 = vmatprep.subr.mxu0 0.0
        %634 = vmatpush1.msra.mxu0 %v506
        %635 = vmatprep.subr.mxu0 0.0
        %636 = vmatpush1.msra.mxu0 %v507
        %637 = vmatprep.subr.mxu0 0.0
        %638 = vmatpush1.msra.mxu0 %v508
        %639 = vmatprep.subr.mxu0 0.0
        %640 = vmatpush1.msra.mxu0 %v509
        %641 = vmatprep.subr.mxu0 0.0
        %642 = vmatpush1.msra.mxu0 %v510
        %643 = vmatprep.subr.mxu0 0.0
        %644 = vmatpush1.msra.mxu0 %v511
        %645 = vmatprep.subr.mxu0 0.0
        %646 = vmatpush1.msra.mxu0 %v512
        %647 = vmatprep.subr.mxu0 0.0
        %648 = vmatpush1.msra.mxu0 %v513
        %649 = vmatprep.subr.mxu0 0.0
        %650 = vmatpush1.msra.mxu0 %v514
        %651 = vmatprep.subr.mxu0 0.0
        %652 = vmatpush1.msra.mxu0 %v515
        %653 = vmatprep.subr.mxu0 0.0
        %654 = vmatpush1.msra.mxu0 0.0
        %655 = vmatprep.subr.mxu0 0.0
        %656 = vmatpush1.msra.mxu0 0.0
        %657 = vmatprep.subr.mxu0 0.0
        %658 = vmatpush1.msra.mxu0 0.0
        %659 = vmatprep.subr.mxu0 0.0
        %660 = vmatpush1.msra.mxu0 0.0
        %661 = vmatprep.subr.mxu0 0.0
        %662 = vmatpush1.msra.mxu0 0.0
        %663 = vmatprep.subr.mxu0 0.0
        %664 = vmatpush1.msra.mxu0 0.0
        %665 = vmatprep.subr.mxu0 0.0
        %666 = vmatpush1.msra.mxu0 0.0
        %667 = vmatprep.subr.mxu0 0.0
        %668 = vmatpush1.msra.mxu0 0.0
        %669 = vmatprep.subr.mxu0 0.0
        %670 = vmatpush1.msra.mxu0 0.0
        %671 = vmatprep.subr.mxu0 0.0
        %672 = vmatpush1.msra.mxu0 0.0
        %673 = vmatprep.subr.mxu0 0.0
        %674 = vmatpush1.msra.mxu0 0.0
        %675 = vmatprep.subr.mxu0 0.0
        %676 = vmatpush1.msra.mxu0 0.0
        %677 = vmatprep.subr.mxu0 0.0
        %678 = vmatpush1.msra.mxu0 0.0
        %679 = vmatprep.subr.mxu0 0.0
        %680 = vmatpush1.msra.mxu0 0.0
        %681 = vmatprep.subr.mxu0 0.0
        %682 = vmatpush1.msra.mxu0 0.0
        %683 = vmatprep.subr.mxu0 0.0
        %684 = vmatpush1.msra.mxu0 0.0
        %685 = vmatprep.mubr.f32.mxu0 0.0
        %686 = vmatmul.mubr.f32.gmra.mrb[0].mxu0 %v464
        %v687 = vpop.f32.mrb[0].mxu0
        %v688 = vadd.f32 0.0, %v687
        %v689 = vpop.f32.mrb[0].mxu0
        %690 = vmatprep.mubr.f32.mxu0 0.0
        %691 = vmatmul.mubr.f32.gmra.mrb[0].mxu0 %v468
        %v692 = vpop.f32.mrb[0].mxu0
        %v693 = vadd.f32 0.0, %v692
        %v694 = vpop.f32.mrb[0].mxu0
        %695 = vmatprep.mubr.f32.mxu0 0.0
        %696 = vmatmul.mubr.f32.gmra.mrb[0].mxu0 %v474
        %v697 = vpop.f32.mrb[0].mxu0
        %v698 = vadd.f32 0.0, %v697
        %v699 = vpop.f32.mrb[0].mxu0
        %700 = vmatprep.mubr.f32.mxu0 0.0
        %701 = vmatmul.mubr.f32.gmra.mrb[0].mxu0 %v478
        %v702 = vpop.f32.mrb[0].mxu0
        %v703 = vadd.f32 0.0, %v702
        %v704 = vpop.f32.mrb[0].mxu0
        %705 = vmatprep.mubr.f32.mxu0 0.0
        %706 = vmatmul.mubr.f32.gmra.mrb[0].mxu0 %v484
        %v707 = vpop.f32.mrb[0].mxu0
        %v708 = vadd.f32 0.0, %v707
        %v709 = vpop.f32.mrb[0].mxu0
        %710 = vmatprep.mubr.f32.mxu0 0.0
        %711 = vmatmul.mubr.f32.gmra.mrb[0].mxu0 %v488
        %v712 = vpop.f32.mrb[0].mxu0
        %v713 = vadd.f32 0.0, %v712
        %v714 = vpop.f32.mrb[0].mxu0
        %715 = vmatprep.mubr.f32.mxu0 0.0
        %716 = vmatmul.mubr.f32.gmra.mrb[0].mxu0 %v494
        %v717 = vpop.f32.mrb[0].mxu0
        %v718 = vadd.f32 0.0, %v717
        %v719 = vpop.f32.mrb[0].mxu0
        %720 = vmatprep.mubr.f32.mxu0 0.0
        %721 = vmatmul.mubr.f32.gmra.mrb[0].mxu0 %v498
        %v722 = vpop.f32.mrb[0].mxu0
        %v723 = vadd.f32 0.0, %v722
        %v724 = vpop.f32.mrb[0].mxu0
        %725 = vdwg.mxu0
        %v726 = vadd.f32 %v462, %v583
        %v727 = vadd.f32 %v466, %v588
        %v728 = vadd.f32 %v472, %v593
        %v729 = vadd.f32 %v476, %v598
        %v730 = vadd.f32 %v482, %v603
        %v731 = vadd.f32 %v486, %v608
        %v732 = vadd.f32 %v492, %v613
        %v733 = vadd.f32 %v496, %v618
        %v734 = vpack.c.bf16 %v727, %v726
        %v735 = vpack.c.bf16 %v729, %v728
        %v736 = vpack.c.bf16 %v731, %v730
        %v737 = vpack.c.bf16 %v733, %v732
        %v742 = vunpack.c.l.b16 %v734
        %v743 = vunpack.c.h.b16 %v734
        %v744 = vunpack.c.l.b16 %v735
        %v745 = vunpack.c.h.b16 %v735
        %v746 = vunpack.c.l.b16 %v736
        %v747 = vunpack.c.h.b16 %v736
        %v748 = vunpack.c.l.b16 %v737
        %v749 = vunpack.c.h.b16 %v737
        %v750 = vpack.c.b16 %v742, %v742
        %v751 = vpack.c.b16 %v743, %v743
        %v752 = vpack.c.b16 %v744, %v744
        %v753 = vpack.c.b16 %v745, %v745
        %v754 = vpack.c.b16 %v746, %v746
        %v755 = vpack.c.b16 %v747, %v747
        %v756 = vpack.c.b16 %v748, %v748
        %v757 = vpack.c.b16 %v749, %v749
        %766 = vst [vmem:[%s275] sm:$0xf] %v750
        %767 = vst [vmem:[%s275 + $0x4] sm:$0xf] %v751
        %768 = vst [vmem:[%s275 + $0x8] sm:$0xf] %v752
        %769 = vst [vmem:[%s275 + $0xc] sm:$0xf] %v753
        %770 = vst [vmem:[%s275 + $0x10] sm:$0xf] %v754
        %771 = vst [vmem:[%s275 + $0x14] sm:$0xf] %v755
        %772 = vst [vmem:[%s275 + $0x18] sm:$0xf] %v756
        %773 = vst [vmem:[%s275 + $0x1c] sm:$0xf] %v757
        %v774 = vadd.f32 %v464, %v688
        %v775 = vadd.f32 %v468, %v693
        %v776 = vadd.f32 %v474, %v698
        %v777 = vadd.f32 %v478, %v703
        %v778 = vadd.f32 %v484, %v708
        %v779 = vadd.f32 %v488, %v713
        %v780 = vadd.f32 %v494, %v718
        %v781 = vadd.f32 %v498, %v723
        %782 = vst [vmem:[%s282] sm:$0xff] %v774
        %783 = vst [vmem:[%s282 + $0x8] sm:$0xff] %v775
        %784 = vst [vmem:[%s282 + $0x10] sm:$0xff] %v776
        %785 = vst [vmem:[%s282 + $0x18] sm:$0xff] %v777
        %786 = vst [vmem:[%s282 + $0x20] sm:$0xff] %v778
        %787 = vst [vmem:[%s282 + $0x28] sm:$0xff] %v779
        %788 = vst [vmem:[%s282 + $0x30] sm:$0xff] %v780
        %789 = vst [vmem:[%s282 + $0x38] sm:$0xff] %v781
        %s790 = sand.u32 %s124, 1
        %s791 = scalar_lea.sflag [#allocation4], %s790
        %s792 = sand.u32 %s124, 1
        %s793 = smul.addr %s792, 32
        %s794 = scalar_lea.vmem [#allocation8], %s793
        %s795 = sand.u32 %s150, 1
        %s796 = scalar_lea.sflag [#allocation10], %s795
        %s797 = sand.u32 %s150, 1
        %s798 = smul.addr %s797, 64
        %s799 = scalar_lea.vmem [#allocation9], %s798
        // Predicated region
        $region49: #{tpu_custom_call.1} parent=35 // pred_check
          %p800 = pneg %p134
        $region50: #{tpu_custom_call.1} parent=35 // pred_check_branch
          %802 = sbr.rel (%p800) target = $region52
        $region51: #{tpu_custom_call.1} parent=35 // pred_region
          %s803 = smul.u32 8, %s27
          %s805 = ssub.s32 512, 512
          %806 = vsyncadd %s791, %s805
          %s807 = smul.addr %s803, 64
          %s808 = scalar_lea.hbm %s4, %s807
          %s809 = sshll.u32 %s794, 4
          %s810 = int_to_ptr.vmem [resolvable:$true] %s809
          %815 = dma.vmem_to_hbm [thread:$0]  %s810, 512, %s808, %s791, 64, 64, 4
        $region52: #{tpu_custom_call.1} parent=35 // pred_fallthru
          _
        // Predicated region
        $region53: #{tpu_custom_call.1} parent=35 // pred_check
          %p816 = pneg %p160
        $region54: #{tpu_custom_call.1} parent=35 // pred_check_branch
          %818 = sbr.rel (%p816) target = $region56
        $region55: #{tpu_custom_call.1} parent=35 // pred_region
          %s819 = smul.u32 8, %s27
          %s821 = ssub.s32 1024, 1024
          %822 = vsyncadd %s796, %s821
          %s823 = smul.addr %s819, 128
          %s824 = scalar_lea.hbm %s5, %s823
          %s825 = sshll.u32 %s799, 4
          %s826 = int_to_ptr.vmem [resolvable:$true] %s825
          %831 = dma.vmem_to_hbm [thread:$0]  %s826, 1024, %s824, %s796, 128, 128, 8
        $region56: #{tpu_custom_call.1} parent=35 // pred_fallthru
          _
      $region36: #{tpu_custom_call.1} parent=5 // pred_fallthru
        _
      %p832 = scmp.le.s32.totalorder 2, %s22
      // Predicated region
      $region57: #{tpu_custom_call.1} parent=5 // pred_check
        %p833 = pneg %p832
      $region58: #{tpu_custom_call.1} parent=5 // pred_check_branch
        %835 = sbr.rel (%p833) target = $region60
      $region59: #{tpu_custom_call.1} parent=5 // pred_region
        %s836 = ssub.s32 %s22, 2
        // Predicated region
        $region61: #{tpu_custom_call.1} parent=59 // pred_check
          %p837 = pneg %p140
        $region62: #{tpu_custom_call.1} parent=59 // pred_check_branch
          %839 = sbr.rel (%p837) target = $region64
        $region63: #{tpu_custom_call.1} parent=59 // pred_region
          %s840 = sand.u32 %s125, 1
          %s841 = scalar_lea.sflag [#allocation4], %s840
          %s842 = sand.u32 %s125, 1
          %s843 = smul.addr %s842, 32
          %s844 = scalar_lea.vmem [#allocation8], %s843
          %845 = dma.done %s841, 512
        $region64: #{tpu_custom_call.1} parent=59 // pred_fallthru
          _
        // Predicated region
        $region65: #{tpu_custom_call.1} parent=59 // pred_check
          %p846 = pneg %p166
        $region66: #{tpu_custom_call.1} parent=59 // pred_check_branch
          %848 = sbr.rel (%p846) target = $region68
        $region67: #{tpu_custom_call.1} parent=59 // pred_region
          %s849 = sand.u32 %s151, 1
          %s850 = scalar_lea.sflag [#allocation10], %s849
          %s851 = sand.u32 %s151, 1
          %s852 = smul.addr %s851, 64
          %s853 = scalar_lea.vmem [#allocation9], %s852
          %854 = dma.done %s850, 1024
        $region68: #{tpu_custom_call.1} parent=59 // pred_fallthru
          _
      $region60: #{tpu_custom_call.1} parent=5 // pred_fallthru
        _
    $region6: #{tpu_custom_call.1} parent=1 // loop_footer
      %s26 = sadd.s32 1, %s22
    $region7: #{tpu_custom_call.1} parent=1 // loop_footer_branch
      %21 = sbr.rel target = $region3
    $region8: #{tpu_custom_call.1} parent=1 // loop_exit
      _
    %855 = vsyncpa [#allocation3], 1
    %s856 = scalar_lea.sflag [#allocation3], 1
    %857 = vsyncpa %s856, 1
    %858 = vsyncpa [#allocation6], 1
    %859 = vsyncpa [#allocation4], 1
    %s860 = scalar_lea.sflag [#allocation4], 1
    %861 = vsyncpa %s860, 1
    %862 = vsyncpa [#allocation10], 1
    %s863 = scalar_lea.sflag [#allocation10], 1
    %864 = vsyncpa %s863, 1

</llo_original>
